<compile_context>
chip_gen: v7x
topology: tpu7x:2x2x1
jax: 0.10.0
libtpu: 0.0.40
codegen_flags: <defaults>
</compile_context>

<pallas_src>
import jax
import jax.numpy as jnp
from jax.experimental import pallas as pl
from jax.experimental.pallas import tpu as pltpu


def _round_up(x, m):
    return ((x + m - 1) // m) * m


def _cdiv(a, b):
    return -(-a // b)


# ---------------------------------------------------------------------------
# Kernels
# ---------------------------------------------------------------------------

def ffn_kernel_out_acc(x_ref, w1_ref, b1_ref, w2_ref, b2_ref, o_ref):
    """f32 output: accumulate directly into the VMEM-resident output block."""
    k = pl.program_id(1)

    @pl.when(k == 0)
    def _init():
        # Seed the accumulator with the output bias (once per row tile).
        o_ref[...] = jnp.broadcast_to(b2_ref[...], o_ref.shape).astype(o_ref.dtype)

    # First GEMM chunk (MXU, f32 accumulate) + bias + ReLU (VPU).
    h = jnp.dot(x_ref[...], w1_ref[...], preferred_element_type=jnp.float32)
    h = jnp.maximum(h + b1_ref[...], 0.0)

    # Second GEMM chunk, accumulated into the resident f32 output block.
    o_ref[...] += jnp.dot(h.astype(w2_ref.dtype), w2_ref[...],
                          preferred_element_type=jnp.float32)


def ffn_kernel_scratch_acc(x_ref, w1_ref, b1_ref, w2_ref, b2_ref, o_ref, acc_ref):
    """Low-precision output: accumulate in f32 scratch, cast once at the end."""
    k = pl.program_id(1)

    @pl.when(k == 0)
    def _init():
        acc_ref[...] = jnp.broadcast_to(b2_ref[...], acc_ref.shape).astype(jnp.float32)

    h = jnp.dot(x_ref[...], w1_ref[...], preferred_element_type=jnp.float32)
    h = jnp.maximum(h + b1_ref[...], 0.0)
    acc_ref[...] += jnp.dot(h.astype(w2_ref.dtype), w2_ref[...],
                            preferred_element_type=jnp.float32)

    @pl.when(k == pl.num_programs(1) - 1)
    def _finalize():
        o_ref[...] = acc_ref[...].astype(o_ref.dtype)


# ---------------------------------------------------------------------------
# Tile selection helpers
# ---------------------------------------------------------------------------

def _vmem_working_set(tm, tk, dmp, x_bytes, w_bytes, out_bytes, use_scratch):
    tot = 2 * tm * dmp * x_bytes          # x row tiles    (double-buffered)
    tot += 2 * dmp * tk * w_bytes         # W1 k-slabs     (double-buffered)
    tot += 2 * tk * dmp * w_bytes         # W2 k-slabs     (double-buffered)
    tot += 2 * tm * dmp * out_bytes       # output tiles   (double-buffered)
    tot += 2 * (tk + dmp) * 4             # biases (f32, tiny)
    if use_scratch:
        tot += tm * dmp * 4               # f32 accumulator scratch
    return tot


def _largest_dividing_tile(total, target, multiple=128):
    """Largest multiple of `multiple` <= target that divides `total`."""
    t = max((min(target, total) // multiple) * multiple, multiple)
    while t > multiple and total % t != 0:
        t -= multiple
    return t


# ---------------------------------------------------------------------------
# Wrapper
# ---------------------------------------------------------------------------

def feed_forward(x, w1, b1, w2, b2, *, tm=None, tk=None, weight_dtype=None):
    """x: (..., d_model) -> same shape.
       w1: (d_model, d_hidden), b1: (d_hidden,),
       w2: (d_hidden, d_model), b2: (d_model,).
       weight_dtype: optional (e.g. jnp.bfloat16) to stream weights (and x) in
       low precision; biases & accumulation stay f32."""
    out_dtype = x.dtype
    d_model = x.shape[-1]
    d_hidden = w1.shape[1]
    lead = x.shape[:-1]

    if weight_dtype is not None:
        w1 = w1.astype(weight_dtype)
        w2 = w2.astype(weight_dtype)
        x = x.astype(weight_dtype)
    w_dtype = w1.dtype
    x_dtype = x.dtype

    xm = x.reshape(-1, d_model)
    M = xm.shape[0]

    x_bytes = jnp.dtype(x_dtype).itemsize
    w_bytes = jnp.dtype(w_dtype).itemsize
    out_bytes = jnp.dtype(out_dtype).itemsize
    use_scratch = out_dtype != jnp.float32
    gran = {4: 8, 2: 16, 1: 32}.get(x_bytes, 8)   # sublane packing of the x operand

    dmp = _round_up(d_model, 128)   # lane-dense output, (8,128)-legal blocks
    dhp = _round_up(d_hidden, 128)

    # ---- VMEM budget from the actual part (64 MiB/TC on v7x, 128 MiB v5e/v6e)
    try:
        vmem_cap = int(pltpu.get_tpu_info().vmem_capacity_bytes)
    except Exception:
        vmem_cap = 64 * 1024 * 1024
    vmem_budget = int(min(vmem_cap - (8 << 20), 112 << 20))

    # ---- tile sizes --------------------------------------------------------
    # tk: hidden-dim k-slab size (must divide the padded hidden dim).
    if tk is None:
        tk_target = 1024 if vmem_budget >= (96 << 20) else 512
        tk = _largest_dividing_tile(dhp, tk_target)
    else:
        tk = _largest_dividing_tile(dhp, _round_up(tk, 128))

    # tm: row tile. Bigger tm amortizes the per-row-tile re-streaming of W1/W2
    # (weight-stream intensity ~ tm/w_bytes FLOP/byte), so take the largest tm
    # that fits the derived VMEM budget.
    if tm is None:
        tm = _round_up(min(512, _round_up(M, gran)), gran)
        while tm > gran and _vmem_working_set(tm, tk, dmp, x_bytes, w_bytes,
                                              out_bytes, use_scratch) > vmem_budget:
            tm = max(_round_up(tm // 2, gran), gran)
        while tk > 128 and _vmem_working_set(tm, tk, dmp, x_bytes, w_bytes,
                                             out_bytes, use_scratch) > vmem_budget:
            tk = _largest_dividing_tile(dhp, tk - 128)
    else:
        tm = _round_up(tm, gran)

    # Guarantee >= 2 row tiles so the "parallel" axis can shard across v7x's
    # two TensorCores (harmless on single-TC parts).
    if M > gran and _cdiv(M, tm) < 2:
        tm = _round_up(_cdiv(M, 2), gran)

    Mp = _round_up(M, tm)

    # ---- zero-padding (skipped entirely for already-aligned tensors) -------
    def _pad(a, pads):
        return a if all(lo == 0 and hi == 0 for lo, hi in pads) else jnp.pad(a, pads)

    xm_p = _pad(xm, ((0, Mp - M), (0, dmp - d_model)))
    w1_p = _pad(w1, ((0, dmp - d_model), (0, dhp - d_hidden)))
    w2_p = _pad(w2, ((0, dhp - d_hidden), (0, dmp - d_model)))
    b1_p = _pad(b1.astype(jnp.float32), ((0, dhp - d_hidden),)).reshape(1, dhp)
    b2_p = _pad(b2.astype(jnp.float32), ((0, dmp - d_model),)).reshape(1, dmp)

    grid = (Mp // tm, dhp // tk)   # (row tiles: parallel, hidden chunks: arbitrary)
    n_row_tiles = grid[0]

    cost = pl.CostEstimate(
        flops=4 * Mp * dmp * dhp,   # two GEMMs on padded dims
        transcendentals=0,
        bytes_accessed=(Mp * dmp * x_bytes                         # x read once
                        + n_row_tiles * 2 * dmp * dhp * w_bytes    # W1+W2 per row tile
                        + n_row_tiles * (dhp + dmp) * 4            # biases (f32)
                        + Mp * dmp * out_bytes),                   # output write
    )

    kernel = ffn_kernel_scratch_acc if use_scratch else ffn_kernel_out_acc
    scratch_shapes = [pltpu.VMEM((tm, dmp), jnp.float32)] if use_scratch else []

    out = pl.pallas_call(
        kernel,
        out_shape=jax.ShapeDtypeStruct((Mp, dmp), out_dtype),
        grid_spec=pltpu.PrefetchScalarGridSpec(
            num_scalar_prefetch=0,
            grid=grid,
            in_specs=[
                pl.BlockSpec((tm, dmp), lambda i, k: (i, 0)),   # x row tile (resident over k)
                pl.BlockSpec((dmp, tk), lambda i, k: (0, k)),   # W1 k-slab (streams)
                pl.BlockSpec((1, tk), lambda i, k: (0, k)),     # b1 k-slab
                pl.BlockSpec((tk, dmp), lambda i, k: (k, 0)),   # W2 k-slab (streams)
                pl.BlockSpec((1, dmp), lambda i, k: (0, 0)),    # b2 (tiny, resident)
            ],
            out_specs=pl.BlockSpec((tm, dmp), lambda i, k: (i, 0)),
            scratch_shapes=scratch_shapes,
        ),
        compiler_params=pltpu.CompilerParams(
            dimension_semantics=("parallel", "arbitrary"),
            vmem_limit_bytes=vmem_budget,
        ),
        cost_estimate=cost,
    )(xm_p, w1_p, b1_p, w2_p, b2_p)

    return out[:M, :d_model].reshape(*lead, d_model)


def init_params(key, d_model, d_hidden, dtype=jnp.float32):
    # Deterministic init mimicking nn.Linear's uniform(-1/sqrt(fan_in), 1/sqrt(fan_in)).
    k1, k2, k3, k4 = jax.random.split(key, 4)
    bound1 = 1.0 / (d_model ** 0.5)
    bound2 = 1.0 / (d_hidden ** 0.5)
    w1 = jax.random.uniform(k1, (d_model, d_hidden), dtype, -bound1, bound1)
    b1 = jax.random.uniform(k2, (d_hidden,), dtype, -bound1, bound1)
    w2 = jax.random.uniform(k3, (d_hidden, d_model), dtype, -bound2, bound2)
    b2 = jax.random.uniform(k4, (d_model,), dtype, -bound2, bound2)
    return w1, b1, w2, b2


if __name__ == "__main__":
    key = jax.random.PRNGKey(0)
    kx, kp, kx2, kp2 = jax.random.split(key, 4)

    # Test 1: toy shape implied by the module (small dims, ragged vs 128 padding).
    batch, seq, d_model, d_hidden = 2, 8, 32, 64
    x = jax.random.normal(kx, (batch, seq, d_model), jnp.float32)
    w1, b1, w2, b2 = init_params(kp, d_model, d_hidden)
    out = jax.block_until_ready(feed_forward(x, w1, b1, w2, b2))
    ref = jnp.maximum(x @ w1 + b1, 0.0) @ w2 + b2
    assert out.shape == x.shape
    assert jnp.allclose(out, ref, atol=1e-4, rtol=1e-4), "test1 mismatch vs reference"

    # Test 2: ragged-M padding, multiple row tiles and hidden-dim k-tiling.
    batch2, seq2, dm2, dh2 = 2, 150, 192, 1024   # M=300 (not a multiple of tm)
    x2 = jax.random.normal(kx2, (batch2, seq2, dm2), jnp.float32)
    p2 = init_params(kp2, dm2, dh2)
    out2 = jax.block_until_ready(feed_forward(x2, *p2))
    ref2 = jnp.maximum(x2 @ p2[0] + p2[1], 0.0) @ p2[2] + p2[3]
    assert out2.shape == x2.shape
    assert jnp.allclose(out2, ref2, atol=1e-3, rtol=1e-3), "test2 mismatch vs reference"

    # Test 3: bf16 weight/activation streaming (f32 accumulate), loose tolerance.
    out3 = jax.block_until_ready(
        feed_forward(x, w1, b1, w2, b2, weight_dtype=jnp.bfloat16))
    assert out3.shape == x.shape
    assert jnp.allclose(out3, ref, atol=5e-2, rtol=5e-2), "test3 mismatch vs reference"

    print("KERNEL_OK")
</pallas_src>

<mosaic_0001>
module attributes {stable_mosaic.version = 11 : i64} {
  func.func @ffn_kernel_out_acc(%arg0: i32, %arg1: i32, %arg2: memref<8x128xf32, #tpu.memory_space<vmem>>, %arg3: memref<128x128xf32, #tpu.memory_space<vmem>>, %arg4: memref<1x128xf32, #tpu.memory_space<vmem>>, %arg5: memref<128x128xf32, #tpu.memory_space<vmem>>, %arg6: memref<1x128xf32, #tpu.memory_space<vmem>>, %arg7: memref<8x128xf32, #tpu.memory_space<vmem>>) attributes {dimension_semantics = [#tpu.dimension_semantics<parallel>, #tpu.dimension_semantics<arbitrary>], iteration_bounds = array<i64: 2, 1>, scalar_prefetch = 0 : i64, scratch_operands = 0 : i64, tpu.core_type = #tpu.core_type<tc>, window_params = [{transform_indices = @transform_0, window_bounds = array<i64: 8, 128>}, {transform_indices = @transform_1, window_bounds = array<i64: 128, 128>}, {transform_indices = @transform_2, window_bounds = array<i64: 1, 128>}, {transform_indices = @transform_3, window_bounds = array<i64: 128, 128>}, {pipeline_mode = #tpu.pipeline_mode<synchronous>, transform_indices = @transform_4, window_bounds = array<i64: 1, 128>}, {transform_indices = @transform_5, window_bounds = array<i64: 8, 128>}]} {
    %c0_i32 = arith.constant 0 : i32
    %0 = arith.cmpi eq, %arg1, %c0_i32 : i32
    %1 = arith.extui %0 : i1 to i32
    %c0_i32_0 = arith.constant 0 : i32
    %2 = arith.cmpi ne, %1, %c0_i32_0 : i32
    scf.if %2 {
      %c0_14 = arith.constant 0 : index
      %c0_15 = arith.constant 0 : index
      %16 = vector.load %arg6[%c0_14, %c0_15] : memref<1x128xf32, #tpu.memory_space<vmem>>, vector<1x128xf32>
      %17 = vector.shape_cast %16 : vector<1x128xf32> to vector<1x128xf32>
      %18 = vector.broadcast %17 : vector<1x128xf32> to vector<8x128xf32>
      %c0_16 = arith.constant 0 : index
      %c0_17 = arith.constant 0 : index
      %19 = vector.load %arg7[%c0_16, %c0_17] : memref<8x128xf32, #tpu.memory_space<vmem>>, vector<8x128xf32>
      tpu.vector_store %arg7[%c0_16, %c0_17], %18 {strides = array<i32>} : memref<8x128xf32, #tpu.memory_space<vmem>>, vector<8x128xf32>,
    } else {
    }
    %c0 = arith.constant 0 : index
    %c0_1 = arith.constant 0 : index
    %3 = vector.load %arg2[%c0, %c0_1] : memref<8x128xf32, #tpu.memory_space<vmem>>, vector<8x128xf32>
    %c0_2 = arith.constant 0 : index
    %c0_3 = arith.constant 0 : index
    %4 = vector.load %arg3[%c0_2, %c0_3] : memref<128x128xf32, #tpu.memory_space<vmem>>, vector<128x128xf32>
    %cst = arith.constant dense<0.000000e+00> : vector<8x128xf32>
    %5 = tpu.matmul %3, %4, %cst {dimension_numbers = #tpu.dot_dimension_numbers<[1], [0], [0], [1], [0, 0, 1, 1], [], []>} : vector<8x128xf32>, vector<128x128xf32>, vector<8x128xf32> -> vector<8x128xf32>
    %c0_4 = arith.constant 0 : index
    %c0_5 = arith.constant 0 : index
    %6 = vector.load %arg4[%c0_4, %c0_5] : memref<1x128xf32, #tpu.memory_space<vmem>>, vector<1x128xf32>
    %7 = vector.broadcast %6 : vector<1x128xf32> to vector<8x128xf32>
    %8 = arith.addf %5, %7 : vector<8x128xf32>
    %cst_6 = arith.constant 0.000000e+00 : f32
    %9 = vector.broadcast %cst_6 : f32 to vector<8x128xf32>
    %10 = arith.maximumf %8, %9 : vector<8x128xf32>
    %c0_7 = arith.constant 0 : index
    %c0_8 = arith.constant 0 : index
    %11 = vector.load %arg7[%c0_7, %c0_8] : memref<8x128xf32, #tpu.memory_space<vmem>>, vector<8x128xf32>
    %c0_9 = arith.constant 0 : index
    %c0_10 = arith.constant 0 : index
    %12 = vector.load %arg5[%c0_9, %c0_10] : memref<128x128xf32, #tpu.memory_space<vmem>>, vector<128x128xf32>
    %cst_11 = arith.constant dense<0.000000e+00> : vector<8x128xf32>
    %13 = tpu.matmul %10, %12, %cst_11 {dimension_numbers = #tpu.dot_dimension_numbers<[1], [0], [0], [1], [0, 0, 1, 1], [], []>} : vector<8x128xf32>, vector<128x128xf32>, vector<8x128xf32> -> vector<8x128xf32>
    %14 = arith.addf %11, %13 : vector<8x128xf32>
    %c0_12 = arith.constant 0 : index
    %c0_13 = arith.constant 0 : index
    %15 = vector.load %arg7[%c0_12, %c0_13] : memref<8x128xf32, #tpu.memory_space<vmem>>, vector<8x128xf32>
    tpu.vector_store %arg7[%c0_12, %c0_13], %14 {strides = array<i32>} : memref<8x128xf32, #tpu.memory_space<vmem>>, vector<8x128xf32>,
    return
  }
  func.func @transform_0(%arg0: i32, %arg1: i32) -> (i32, i32) {
    %c0_i32 = arith.constant 0 : i32
    %c0_i32_0 = arith.constant 0 : i32
    return %arg0, %c0_i32 : i32, i32
  }
  func.func @transform_1(%arg0: i32, %arg1: i32) -> (i32, i32) {
    %c0_i32 = arith.constant 0 : i32
    %c0_i32_0 = arith.constant 0 : i32
    return %c0_i32, %arg1 : i32, i32
  }
  func.func @transform_2(%arg0: i32, %arg1: i32) -> (i32, i32) {
    %c0_i32 = arith.constant 0 : i32
    %c0_i32_0 = arith.constant 0 : i32
    return %c0_i32, %arg1 : i32, i32
  }
  func.func @transform_3(%arg0: i32, %arg1: i32) -> (i32, i32) {
    %c0_i32 = arith.constant 0 : i32
    %c0_i32_0 = arith.constant 0 : i32
    return %arg1, %c0_i32 : i32, i32
  }
  func.func @transform_4(%arg0: i32, %arg1: i32) -> (i32, i32) {
    %c0_i32 = arith.constant 0 : i32
    %c0_i32_0 = arith.constant 0 : i32
    %c0_i32_1 = arith.constant 0 : i32
    return %c0_i32, %c0_i32_0 : i32, i32
  }
  func.func @transform_5(%arg0: i32, %arg1: i32) -> (i32, i32) {
    %c0_i32 = arith.constant 0 : i32
    %c0_i32_0 = arith.constant 0 : i32
    return %arg0, %c0_i32 : i32, i32
  }
}

</mosaic_0001>

<llo_original>
// kernel: tpu_custom_call.1
$region0: #{tpu_custom_call.1}
  #allocation0 [shape = 'u32[]', space=smem, size = 0x4, offset = 0x4, fixed_abs, tag = 'smem constant byte address 0x4 - core index']
  #allocation1 [shape = 'u32[144,128]{1,0:T(1,128)}', space=vmem, size = 0x12000, scoped, tag = 'internal scratch']
  %s0 = inlined_call_operand.hbm [shape: f32[16,128], index: 0, kind: input, shape index: {}]
  %s1 = inlined_call_operand.hbm [shape: f32[128,128], index: 1, kind: input, shape index: {}]
  %s2 = inlined_call_operand.vmem [shape: f32[1,128], index: 2, kind: input, shape index: {}]
  %s3 = inlined_call_operand.hbm [shape: f32[128,128], index: 3, kind: input, shape index: {}]
  %s4 = inlined_call_operand.vmem [shape: f32[1,128], index: 4, kind: input, shape index: {}]
  %s5 = inlined_call_operand.hbm [shape: f32[16,128], index: 5, kind: output, shape index: {}]
  %s6 = sld [smem:[#allocation0]]
  $region69: #{tpu_custom_call.1} parent=0
    _
  %s8 = ssub.s32 1, %s6
  %s9 = scalar_select 0, %s8, %s6
  $region1: #{tpu_custom_call.1} parent=0
    #allocation2 [shape = 'u8[8192]{0}', space=vmem, size = 0x2000, scoped, tag = 'input window, operand 0']
    #allocation3 [shape = 's32[2]{0}', space=sflag, size = 0x8, scoped, tag = 'scoped memory for tpu_custom_call.1']
    #allocation4 [shape = 's32[2]{0}', space=sflag, size = 0x8, scoped, tag = 'scoped memory for tpu_custom_call.1']
    #allocation5 [shape = 'u8[65536]{0}', space=vmem, size = 0x10000, scoped, tag = 'input window, operand 1, single buffered']
    #allocation6 [shape = 's32[1]{0}', space=sflag, size = 0x4, scoped, tag = 'scoped memory for tpu_custom_call.1']
    #allocation7 [shape = 'u8[65536]{0}', space=vmem, size = 0x10000, scoped, tag = 'input window, operand 3, single buffered']
    #allocation8 [shape = 'u8[8192]{0}', space=vmem, size = 0x2000, scoped, tag = 'output window, operand 0']
    %10 = vsyncpa [#allocation3], 0
    %s11 = scalar_lea.sflag [#allocation3], 1
    %12 = vsyncpa %s11, 0
    %13 = vsyncpa [#allocation6], 0
    %14 = vsyncpa [#allocation4], 0
    %s15 = scalar_lea.sflag [#allocation4], 1
    %16 = vsyncpa %s15, 0
    loop: start=0, step=1, limit=4
    $region2: #{tpu_custom_call.1} parent=1 // loop_pre_header
      _
    $region3: #{tpu_custom_call.1} parent=1 // loop_header
      %s18 = sphi 0, %s22
      %p19 = scmp.ge.s32.totalorder %s18, 4
      %s25 = sphi 0, %s37
      %s26 = sphi 0, %s33
      %s27 = sphi 0, %s25
      %s28 = sphi 0, %s26
      %s29 = sphi 0, %s27
      %s30 = sphi 0, %s28
      %s40 = sphi 0, %s42
      %s43 = sphi 0, %s40
      %s44 = sphi 0, %s43
      %s60 = sphi 0, %s44
      %s66 = sphi 0, %s68
      %s69 = sphi 0, %s66
      %s70 = sphi 0, %s69
      %s86 = sphi 0, %s70
      %s92 = sphi 0, %s94
      %s95 = sphi 0, %s92
      %s96 = sphi 0, %s95
      %s112 = sphi 0, %s96
      %s118 = sphi 0, %s120
      %s121 = sphi 0, %s118
      %s122 = sphi 0, %s121
      %s138 = sphi 0, %s122
      %s142 = sphi 0, %s142
      %s144 = sphi 0, %s142
      %s145 = sphi 0, %s144
      %s159 = sphi 0, %s145
      %s165 = sphi 0, %s167
      %s168 = sphi 0, %s165
      %s169 = sphi 0, %s168
      %s185 = sphi 0, %s169
    $region4: #{tpu_custom_call.1} parent=1 // loop_header_branch
      %21 = sbr.rel (%p19) target = $region8
    $region5: #{tpu_custom_call.1} parent=1 // loop_body
      %s23 = ssub.s32 %s18, 1
      %s24 = ssub.s32 %s18, 2
      %s31 = sadd.s32 1, %s26
      %p32 = scmp.ge.s32.totalorder %s31, 1
      %s33 = scalar_select %p32, 0, %s31
      %s34 = sadd.s32 1, %s25
      %s35 = scalar_select %p32, %s34, %s25
      %p36 = scmp.ge.s32.totalorder %s35, 2
      %s37 = scalar_select %p36, 0, %s35
      %s38 = ssub.s32 %s25, %s37
      %p39 = scmp.eq.s32.totalorder %s38, 0
      %s41 = sadd.s32 %s40, 1
      %s42 = scalar_select %p39, %s40, %s41
      %p45 = pneg %p39
      %p46 = scmp.eq.s32.totalorder %s18, 1
      %p47 = por %p45, %p46
      %p48 = scmp.ne.s32.totalorder %s40, %s43
      %p49 = scmp.eq.s32.totalorder %s18, 0
      %p50 = por %p48, %p49
      %p51 = scmp.ne.s32.totalorder %s40, %s43
      %p52 = scmp.eq.s32.totalorder %s23, 1
      %p53 = por %p51, %p52
      %p54 = scmp.ne.s32.totalorder %s43, %s44
      %p55 = scmp.eq.s32.totalorder %s23, 0
      %p56 = por %p54, %p55
      %p57 = scmp.ne.s32.totalorder %s43, %s44
      %p58 = scmp.eq.s32.totalorder %s24, 1
      %p59 = por %p57, %p58
      %p61 = scmp.ne.s32.totalorder %s44, %s60
      %p62 = scmp.eq.s32.totalorder %s24, 0
      %p63 = por %p61, %p62
      %s64 = ssub.s32 %s26, %s33
      %p65 = scmp.eq.s32.totalorder %s64, 0
      %s67 = sadd.s32 %s66, 1
      %s68 = scalar_select %p65, %s66, %s67
      %p71 = pneg %p65
      %p72 = scmp.eq.s32.totalorder %s18, 1
      %p73 = por %p71, %p72
      %p74 = scmp.ne.s32.totalorder %s66, %s69
      %p75 = scmp.eq.s32.totalorder %s18, 0
      %p76 = por %p74, %p75
      %p77 = scmp.ne.s32.totalorder %s66, %s69
      %p78 = scmp.eq.s32.totalorder %s23, 1
      %p79 = por %p77, %p78
      %p80 = scmp.ne.s32.totalorder %s69, %s70
      %p81 = scmp.eq.s32.totalorder %s23, 0
      %p82 = por %p80, %p81
      %p83 = scmp.ne.s32.totalorder %s69, %s70
      %p84 = scmp.eq.s32.totalorder %s24, 1
      %p85 = por %p83, %p84
      %p87 = scmp.ne.s32.totalorder %s70, %s86
      %p88 = scmp.eq.s32.totalorder %s24, 0
      %p89 = por %p87, %p88
      %s90 = ssub.s32 %s26, %s33
      %p91 = scmp.eq.s32.totalorder %s90, 0
      %s93 = sadd.s32 %s92, 1
      %s94 = scalar_select %p91, %s92, %s93
      %p97 = pneg %p91
      %p98 = scmp.eq.s32.totalorder %s18, 1
      %p99 = por %p97, %p98
      %p100 = scmp.ne.s32.totalorder %s92, %s95
      %p101 = scmp.eq.s32.totalorder %s18, 0
      %p102 = por %p100, %p101
      %p103 = scmp.ne.s32.totalorder %s92, %s95
      %p104 = scmp.eq.s32.totalorder %s23, 1
      %p105 = por %p103, %p104
      %p106 = scmp.ne.s32.totalorder %s95, %s96
      %p107 = scmp.eq.s32.totalorder %s23, 0
      %p108 = por %p106, %p107
      %p109 = scmp.ne.s32.totalorder %s95, %s96
      %p110 = scmp.eq.s32.totalorder %s24, 1
      %p111 = por %p109, %p110
      %p113 = scmp.ne.s32.totalorder %s96, %s112
      %p114 = scmp.eq.s32.totalorder %s24, 0
      %p115 = por %p113, %p114
      %s116 = ssub.s32 %s26, %s33
      %p117 = scmp.eq.s32.totalorder %s116, 0
      %s119 = sadd.s32 %s118, 1
      %s120 = scalar_select %p117, %s118, %s119
      %p123 = pneg %p117
      %p124 = scmp.eq.s32.totalorder %s18, 1
      %p125 = por %p123, %p124
      %p126 = scmp.ne.s32.totalorder %s118, %s121
      %p127 = scmp.eq.s32.totalorder %s18, 0
      %p128 = por %p126, %p127
      %p129 = scmp.ne.s32.totalorder %s118, %s121
      %p130 = scmp.eq.s32.totalorder %s23, 1
      %p131 = por %p129, %p130
      %p132 = scmp.ne.s32.totalorder %s121, %s122
      %p133 = scmp.eq.s32.totalorder %s23, 0
      %p134 = por %p132, %p133
      %p135 = scmp.ne.s32.totalorder %s121, %s122
      %p136 = scmp.eq.s32.totalorder %s24, 1
      %p137 = por %p135, %p136
      %p139 = scmp.ne.s32.totalorder %s122, %s138
      %p140 = scmp.eq.s32.totalorder %s24, 0
      %p141 = por %p139, %p140
      %s143 = sadd.s32 %s142, 1
      %p146 = scmp.eq.s32.totalorder %s18, 1
      %p147 = scmp.ne.s32.totalorder %s142, %s144
      %p148 = scmp.eq.s32.totalorder %s18, 0
      %p149 = por %p147, %p148
      %p150 = scmp.ne.s32.totalorder %s142, %s144
      %p151 = scmp.eq.s32.totalorder %s23, 1
      %p152 = por %p150, %p151
      %p153 = scmp.ne.s32.totalorder %s144, %s145
      %p154 = scmp.eq.s32.totalorder %s23, 0
      %p155 = por %p153, %p154
      %p156 = scmp.ne.s32.totalorder %s144, %s145
      %p157 = scmp.eq.s32.totalorder %s24, 1
      %p158 = por %p156, %p157
      %p160 = scmp.ne.s32.totalorder %s145, %s159
      %p161 = scmp.eq.s32.totalorder %s24, 0
      %p162 = por %p160, %p161
      %s163 = ssub.s32 %s25, %s37
      %p164 = scmp.eq.s32.totalorder %s163, 0
      %s166 = sadd.s32 %s165, 1
      %s167 = scalar_select %p164, %s165, %s166
      %p170 = pneg %p164
      %p171 = scmp.eq.s32.totalorder %s18, 1
      %p172 = por %p170, %p171
      %p173 = scmp.ne.s32.totalorder %s165, %s168
      %p174 = scmp.eq.s32.totalorder %s18, 0
      %p175 = por %p173, %p174
      %p176 = scmp.ne.s32.totalorder %s165, %s168
      %p177 = scmp.eq.s32.totalorder %s23, 1
      %p178 = por %p176, %p177
      %p179 = scmp.ne.s32.totalorder %s168, %s169
      %p180 = scmp.eq.s32.totalorder %s23, 0
      %p181 = por %p179, %p180
      %p182 = scmp.ne.s32.totalorder %s168, %s169
      %p183 = scmp.eq.s32.totalorder %s24, 1
      %p184 = por %p182, %p183
      %p186 = scmp.ne.s32.totalorder %s169, %s185
      %p187 = scmp.eq.s32.totalorder %s24, 0
      %p188 = por %p186, %p187
      %p189 = scmp.le.s32.totalorder 1, %s18
      %p190 = scmp.lt.s32.totalorder %s18, 3
      %p191 = pnand %p189, %p190
      %p192 = pneg %p191
      // Predicated region
      $region9: #{tpu_custom_call.1} parent=5 // pred_check
        _
      $region10: #{tpu_custom_call.1} parent=5 // pred_check_branch
        %194 = sbr.rel (%p191) target = $region12
      $region11: #{tpu_custom_call.1} parent=5 // pred_region
        %s195 = ssub.s32 %s18, 1
        // Predicated region
        $region13: #{tpu_custom_call.1} parent=11 // pred_check
          %p196 = pneg %p82
        $region14: #{tpu_custom_call.1} parent=11 // pred_check_branch
          %198 = sbr.rel (%p196) target = $region16
        $region15: #{tpu_custom_call.1} parent=11 // pred_region
          %s200 = ssub.s32 2048, 2048
          %201 = vsyncadd [#allocation6], %s200
          %s202 = smul.addr %s28, 128
          %s203 = scalar_lea.hbm %s1, %s202
          %s204 = sshll.u32 [#allocation5], 4
          %s205 = int_to_ptr.vmem [resolvable:$true] %s204
          %210 = dma.hbm_to_vmem [thread:$0]  %s203, 2048, %s205, [#allocation6], 128, 128, 8
        $region16: #{tpu_custom_call.1} parent=11 // pred_fallthru
          _
        // Predicated region
        $region17: #{tpu_custom_call.1} parent=11 // pred_check
          %p211 = pneg %p108
        $region18: #{tpu_custom_call.1} parent=11 // pred_check_branch
          %213 = sbr.rel (%p211) target = $region20
        $region19: #{tpu_custom_call.1} parent=11 // pred_region
          %p214 = scmp.lt.s32.totalorder %s28, 0
          %s215 = scalar_select %p214, %s28, 0
          %s216 = scalar_lea.vmem %s2, %s215
        $region20: #{tpu_custom_call.1} parent=11 // pred_fallthru
          _
        // Predicated region
        $region21: #{tpu_custom_call.1} parent=11 // pred_check
          %p217 = pneg %p134
        $region22: #{tpu_custom_call.1} parent=11 // pred_check_branch
          %219 = sbr.rel (%p217) target = $region24
        $region23: #{tpu_custom_call.1} parent=11 // pred_region
          %s220 = smul.u32 16, %s28
          %s222 = ssub.s32 2048, 2048
          %223 = vsyncadd [#allocation6], %s222
          %s224 = smul.addr %s220, 128
          %s225 = scalar_lea.hbm %s3, %s224
          %s226 = sshll.u32 [#allocation7], 4
          %s227 = int_to_ptr.vmem [resolvable:$true] %s226
          %232 = dma.hbm_to_vmem [thread:$0]  %s225, 2048, %s227, [#allocation6], 128, 128, 8
        $region24: #{tpu_custom_call.1} parent=11 // pred_fallthru
          _
        // Predicated region
        $region25: #{tpu_custom_call.1} parent=11 // pred_check
          %p233 = pneg %p155
        $region26: #{tpu_custom_call.1} parent=11 // pred_check_branch
          %235 = sbr.rel (%p233) target = $region28
        $region27: #{tpu_custom_call.1} parent=11 // pred_region
          _
        $region28: #{tpu_custom_call.1} parent=11 // pred_fallthru
          _
      $region12: #{tpu_custom_call.1} parent=5 // pred_fallthru
        _
      %p236 = scmp.lt.s32.totalorder %s18, 2
      // Predicated region
      $region29: #{tpu_custom_call.1} parent=5 // pred_check
        %p237 = pneg %p236
      $region30: #{tpu_custom_call.1} parent=5 // pred_check_branch
        %239 = sbr.rel (%p237) target = $region32
      $region31: #{tpu_custom_call.1} parent=5 // pred_region
        // Predicated region
        $region33: #{tpu_custom_call.1} parent=31 // pred_check
          %p240 = pneg %p50
        $region34: #{tpu_custom_call.1} parent=31 // pred_check_branch
          %242 = sbr.rel (%p240) target = $region36
        $region35: #{tpu_custom_call.1} parent=31 // pred_region
          %s243 = sand.u32 %s40, 1
          %s244 = scalar_lea.sflag [#allocation3], %s243
          %s245 = sand.u32 %s40, 1
          %s246 = smul.addr %s245, 8
          %s247 = scalar_lea.vmem [#allocation2], %s246
          %s249 = ssub.s32 128, 128
          %250 = vsyncadd %s244, %s249
          %s251 = smul.addr %s25, 128
          %s252 = scalar_lea.hbm %s0, %s251
          %s254 = sshll.u32 %s247, 4
          %s255 = int_to_ptr.vmem [resolvable:$true] %s254
          %257 = dma.hbm_to_vmem [thread:$0]  %s252, 128, %s255, %s244
        $region36: #{tpu_custom_call.1} parent=31 // pred_fallthru
          _
      $region32: #{tpu_custom_call.1} parent=5 // pred_fallthru
        _
      %p258 = scmp.le.s32.totalorder 1, %s18
      %p259 = scmp.lt.s32.totalorder %s18, 3
      %p260 = pnand %p258, %p259
      %p261 = pneg %p260
      // Predicated region
      $region37: #{tpu_custom_call.1} parent=5 // pred_check
        _
      $region38: #{tpu_custom_call.1} parent=5 // pred_check_branch
        %263 = sbr.rel (%p260) target = $region40
      $region39: #{tpu_custom_call.1} parent=5 // pred_region
        %s264 = ssub.s32 %s18, 1
        %s265 = sand.u32 %s43, 1
        %s266 = scalar_lea.sflag [#allocation3], %s265
        %s267 = sand.u32 %s43, 1
        %s268 = smul.addr %s267, 8
        %s269 = scalar_lea.vmem [#allocation2], %s268
        // Predicated region
        $region41: #{tpu_custom_call.1} parent=39 // pred_check
          %p270 = pneg %p56
        $region42: #{tpu_custom_call.1} parent=39 // pred_check_branch
          %272 = sbr.rel (%p270) target = $region44
        $region43: #{tpu_custom_call.1} parent=39 // pred_region
          %273 = dma.done %s266, 128
        $region44: #{tpu_custom_call.1} parent=39 // pred_fallthru
          _
        // Predicated region
        $region45: #{tpu_custom_call.1} parent=39 // pred_check
          %p274 = pneg %p82
        $region46: #{tpu_custom_call.1} parent=39 // pred_check_branch
          %276 = sbr.rel (%p274) target = $region48
        $region47: #{tpu_custom_call.1} parent=39 // pred_region
          %277 = dma.done [#allocation6], 2048
        $region48: #{tpu_custom_call.1} parent=39 // pred_fallthru
          _
        // Predicated region
        $region49: #{tpu_custom_call.1} parent=39 // pred_check
          %p278 = pneg %p134
        $region50: #{tpu_custom_call.1} parent=39 // pred_check_branch
          %280 = sbr.rel (%p278) target = $region52
        $region51: #{tpu_custom_call.1} parent=39 // pred_region
          %281 = dma.done [#allocation6], 2048
        $region52: #{tpu_custom_call.1} parent=39 // pred_fallthru
          _
        %s282 = sand.u32 %s43, 1
        %s283 = scalar_lea.sflag [#allocation3], %s282
        %s284 = sand.u32 %s43, 1
        %s285 = smul.addr %s284, 8
        %s286 = scalar_lea.vmem [#allocation2], %s285
        %p287 = pneg %p56
        %p288 = pneg %p53
        %p289 = pneg %p82
        %p290 = pneg %p79
        %p291 = scmp.lt.s32.totalorder %s28, 0
        %s292 = scalar_select %p291, %s28, 0
        %s293 = scalar_lea.vmem %s2, %s292
        %p294 = pneg %p108
        %p295 = pneg %p105
        %p296 = pneg %p134
        %p297 = pneg %p131
        %p298 = pneg %p155
        %p299 = pneg %p152
        %p300 = pneg %p181
        %p301 = pneg %p178
        %s302 = sand.u32 %s168, 1
        %s303 = scalar_lea.sflag [#allocation4], %s302
        %s304 = sand.u32 %s168, 1
        %s305 = smul.addr %s304, 8
        %s306 = scalar_lea.vmem [#allocation8], %s305
        %p307 = scmp.lt.s32.totalorder %s28, 0
        %s308 = scalar_select %p307, %s28, 0
        %s309 = scalar_lea.vmem %s2, %s308
        %s310 = smul.u32 16, %s28
        %p311 = scmp.eq.s32.totalorder %s28, 0
        // Predicated region
        $region53: #{tpu_custom_call.1} parent=39 // pred_check
          %p312 = pneg %p311
        $region54: #{tpu_custom_call.1} parent=39 // pred_check_branch
          %314 = sbr.rel (%p312) target = $region56
        $region55: #{tpu_custom_call.1} parent=39 // pred_region
          %v315 = vld [vmem:[%s4] sm:$0x1]
          %v317 = vlaneseq
          %v318 = vshrl.u32 %v317, 7
          %v319 = vsub.s32 0, %v318
          %v320 = vrot.slane %v315, %v319
          %322 = vst [vmem:[%s306] sm:$0xff] %v320
        $region56: #{tpu_custom_call.1} parent=39 // pred_fallthru
          _
        %v323 = vld [vmem:[%s269] sm:$0xff]
        %v324 = vld [vmem:[#allocation5] sm:$0xff]
        %v325 = vld [vmem:[#allocation5 + $0x8] sm:$0xff]
        %v326 = vld [vmem:[#allocation5 + $0x10] sm:$0xff]
        %v327 = vld [vmem:[#allocation5 + $0x18] sm:$0xff]
        %v328 = vld [vmem:[#allocation5 + $0x20] sm:$0xff]
        %v329 = vld [vmem:[#allocation5 + $0x28] sm:$0xff]
        %v330 = vld [vmem:[#allocation5 + $0x30] sm:$0xff]
        %v331 = vld [vmem:[#allocation5 + $0x38] sm:$0xff]
        %v332 = vld [vmem:[#allocation5 + $0x40] sm:$0xff]
        %v333 = vld [vmem:[#allocation5 + $0x48] sm:$0xff]
        %v334 = vld [vmem:[#allocation5 + $0x50] sm:$0xff]
        %v335 = vld [vmem:[#allocation5 + $0x58] sm:$0xff]
        %v336 = vld [vmem:[#allocation5 + $0x60] sm:$0xff]
        %v337 = vld [vmem:[#allocation5 + $0x68] sm:$0xff]
        %v338 = vld [vmem:[#allocation5 + $0x70] sm:$0xff]
        %v339 = vld [vmem:[#allocation5 + $0x78] sm:$0xff]
        %v340 = vld [vmem:[%s309] sm:$0x1]
        %v342 = vlaneseq
        %v343 = vshrl.u32 %v342, 7
        %v344 = vsub.s32 0, %v343
        %v345 = vrot.slane %v340, %v344
        %347 = vmatprep.subr.mxu0 0.0
        %348 = vmatpush1.msra.mxu0 %v324
        %349 = vmatprep.subr.mxu0 0.0
        %350 = vmatpush1.msra.mxu0 %v325
        %351 = vmatprep.subr.mxu0 0.0
        %352 = vmatpush1.msra.mxu0 %v326
        %353 = vmatprep.subr.mxu0 0.0
        %354 = vmatpush1.msra.mxu0 %v327
        %355 = vmatprep.subr.mxu0 0.0
        %356 = vmatpush1.msra.mxu0 %v328
        %357 = vmatprep.subr.mxu0 0.0
        %358 = vmatpush1.msra.mxu0 %v329
        %359 = vmatprep.subr.mxu0 0.0
        %360 = vmatpush1.msra.mxu0 %v330
        %361 = vmatprep.subr.mxu0 0.0
        %362 = vmatpush1.msra.mxu0 %v331
        %363 = vmatprep.subr.mxu0 0.0
        %364 = vmatpush1.msra.mxu0 %v332
        %365 = vmatprep.subr.mxu0 0.0
        %366 = vmatpush1.msra.mxu0 %v333
        %367 = vmatprep.subr.mxu0 0.0
        %368 = vmatpush1.msra.mxu0 %v334
        %369 = vmatprep.subr.mxu0 0.0
        %370 = vmatpush1.msra.mxu0 %v335
        %371 = vmatprep.subr.mxu0 0.0
        %372 = vmatpush1.msra.mxu0 %v336
        %373 = vmatprep.subr.mxu0 0.0
        %374 = vmatpush1.msra.mxu0 %v337
        %375 = vmatprep.subr.mxu0 0.0
        %376 = vmatpush1.msra.mxu0 %v338
        %377 = vmatprep.subr.mxu0 0.0
        %378 = vmatpush1.msra.mxu0 %v339
        %379 = vmatprep.subr.mxu0 0.0
        %380 = vmatpush1.msra.mxu0 0.0
        %381 = vmatprep.subr.mxu0 0.0
        %382 = vmatpush1.msra.mxu0 0.0
        %383 = vmatprep.subr.mxu0 0.0
        %384 = vmatpush1.msra.mxu0 0.0
        %385 = vmatprep.subr.mxu0 0.0
        %386 = vmatpush1.msra.mxu0 0.0
        %387 = vmatprep.subr.mxu0 0.0
        %388 = vmatpush1.msra.mxu0 0.0
        %389 = vmatprep.subr.mxu0 0.0
        %390 = vmatpush1.msra.mxu0 0.0
        %391 = vmatprep.subr.mxu0 0.0
        %392 = vmatpush1.msra.mxu0 0.0
        %393 = vmatprep.subr.mxu0 0.0
        %394 = vmatpush1.msra.mxu0 0.0
        %395 = vmatprep.subr.mxu0 0.0
        %396 = vmatpush1.msra.mxu0 0.0
        %397 = vmatprep.subr.mxu0 0.0
        %398 = vmatpush1.msra.mxu0 0.0
        %399 = vmatprep.subr.mxu0 0.0
        %400 = vmatpush1.msra.mxu0 0.0
        %401 = vmatprep.subr.mxu0 0.0
        %402 = vmatpush1.msra.mxu0 0.0
        %403 = vmatprep.subr.mxu0 0.0
        %404 = vmatpush1.msra.mxu0 0.0
        %405 = vmatprep.subr.mxu0 0.0
        %406 = vmatpush1.msra.mxu0 0.0
        %407 = vmatprep.subr.mxu0 0.0
        %408 = vmatpush1.msra.mxu0 0.0
        %409 = vmatprep.subr.mxu0 0.0
        %410 = vmatpush1.msra.mxu0 0.0
        %411 = vmatprep.mubr.f32.mxu0 0.0
        %412 = vmatmul.mubr.f32.gmra.mrb[0].mxu0 %v323
        %v413 = vpop.f32.mrb[0].mxu0
        %v414 = vadd.f32 %v345, %v413
        %v415 = vpop.f32.mrb[0].mxu0
        %416 = vdwg.mxu0
        %v417 = vmax.f32 %v414, 0.0
        %v418 = vld [vmem:[%s306] sm:$0xff]
        %v419 = vld [vmem:[#allocation7] sm:$0xff]
        %v420 = vld [vmem:[#allocation7 + $0x8] sm:$0xff]
        %v421 = vld [vmem:[#allocation7 + $0x10] sm:$0xff]
        %v422 = vld [vmem:[#allocation7 + $0x18] sm:$0xff]
        %v423 = vld [vmem:[#allocation7 + $0x20] sm:$0xff]
        %v424 = vld [vmem:[#allocation7 + $0x28] sm:$0xff]
        %v425 = vld [vmem:[#allocation7 + $0x30] sm:$0xff]
        %v426 = vld [vmem:[#allocation7 + $0x38] sm:$0xff]
        %v427 = vld [vmem:[#allocation7 + $0x40] sm:$0xff]
        %v428 = vld [vmem:[#allocation7 + $0x48] sm:$0xff]
        %v429 = vld [vmem:[#allocation7 + $0x50] sm:$0xff]
        %v430 = vld [vmem:[#allocation7 + $0x58] sm:$0xff]
        %v431 = vld [vmem:[#allocation7 + $0x60] sm:$0xff]
        %v432 = vld [vmem:[#allocation7 + $0x68] sm:$0xff]
        %v433 = vld [vmem:[#allocation7 + $0x70] sm:$0xff]
        %v434 = vld [vmem:[#allocation7 + $0x78] sm:$0xff]
        %435 = vmatprep.subr.mxu0 0.0
        %436 = vmatpush1.msra.mxu0 %v419
        %437 = vmatprep.subr.mxu0 0.0
        %438 = vmatpush1.msra.mxu0 %v420
        %439 = vmatprep.subr.mxu0 0.0
        %440 = vmatpush1.msra.mxu0 %v421
        %441 = vmatprep.subr.mxu0 0.0
        %442 = vmatpush1.msra.mxu0 %v422
        %443 = vmatprep.subr.mxu0 0.0
        %444 = vmatpush1.msra.mxu0 %v423
        %445 = vmatprep.subr.mxu0 0.0
        %446 = vmatpush1.msra.mxu0 %v424
        %447 = vmatprep.subr.mxu0 0.0
        %448 = vmatpush1.msra.mxu0 %v425
        %449 = vmatprep.subr.mxu0 0.0
        %450 = vmatpush1.msra.mxu0 %v426
        %451 = vmatprep.subr.mxu0 0.0
        %452 = vmatpush1.msra.mxu0 %v427
        %453 = vmatprep.subr.mxu0 0.0
        %454 = vmatpush1.msra.mxu0 %v428
        %455 = vmatprep.subr.mxu0 0.0
        %456 = vmatpush1.msra.mxu0 %v429
        %457 = vmatprep.subr.mxu0 0.0
        %458 = vmatpush1.msra.mxu0 %v430
        %459 = vmatprep.subr.mxu0 0.0
        %460 = vmatpush1.msra.mxu0 %v431
        %461 = vmatprep.subr.mxu0 0.0
        %462 = vmatpush1.msra.mxu0 %v432
        %463 = vmatprep.subr.mxu0 0.0
        %464 = vmatpush1.msra.mxu0 %v433
        %465 = vmatprep.subr.mxu0 0.0
        %466 = vmatpush1.msra.mxu0 %v434
        %467 = vmatprep.subr.mxu0 0.0
        %468 = vmatpush1.msra.mxu0 0.0
        %469 = vmatprep.subr.mxu0 0.0
        %470 = vmatpush1.msra.mxu0 0.0
        %471 = vmatprep.subr.mxu0 0.0
        %472 = vmatpush1.msra.mxu0 0.0
        %473 = vmatprep.subr.mxu0 0.0
        %474 = vmatpush1.msra.mxu0 0.0
        %475 = vmatprep.subr.mxu0 0.0
        %476 = vmatpush1.msra.mxu0 0.0
        %477 = vmatprep.subr.mxu0 0.0
        %478 = vmatpush1.msra.mxu0 0.0
        %479 = vmatprep.subr.mxu0 0.0
        %480 = vmatpush1.msra.mxu0 0.0
        %481 = vmatprep.subr.mxu0 0.0
        %482 = vmatpush1.msra.mxu0 0.0
        %483 = vmatprep.subr.mxu0 0.0
        %484 = vmatpush1.msra.mxu0 0.0
        %485 = vmatprep.subr.mxu0 0.0
        %486 = vmatpush1.msra.mxu0 0.0
        %487 = vmatprep.subr.mxu0 0.0
        %488 = vmatpush1.msra.mxu0 0.0
        %489 = vmatprep.subr.mxu0 0.0
        %490 = vmatpush1.msra.mxu0 0.0
        %491 = vmatprep.subr.mxu0 0.0
        %492 = vmatpush1.msra.mxu0 0.0
        %493 = vmatprep.subr.mxu0 0.0
        %494 = vmatpush1.msra.mxu0 0.0
        %495 = vmatprep.subr.mxu0 0.0
        %496 = vmatpush1.msra.mxu0 0.0
        %497 = vmatprep.subr.mxu0 0.0
        %498 = vmatpush1.msra.mxu0 0.0
        %499 = vmatprep.mubr.f32.mxu0 0.0
        %500 = vmatmul.mubr.f32.gmra.mrb[0].mxu0 %v417
        %v501 = vpop.f32.mrb[0].mxu0
        %v502 = vadd.f32 0.0, %v501
        %v503 = vpop.f32.mrb[0].mxu0
        %504 = vdwg.mxu0
        %v505 = vadd.f32 %v418, %v502
        %506 = vst [vmem:[%s306] sm:$0xff] %v505
        %s507 = sand.u32 %s168, 1
        %s508 = scalar_lea.sflag [#allocation4], %s507
        %s509 = sand.u32 %s168, 1
        %s510 = smul.addr %s509, 8
        %s511 = scalar_lea.vmem [#allocation8], %s510
        // Predicated region
        $region57: #{tpu_custom_call.1} parent=39 // pred_check
          %p512 = pneg %p178
        $region58: #{tpu_custom_call.1} parent=39 // pred_check_branch
          %514 = sbr.rel (%p512) target = $region60
        $region59: #{tpu_custom_call.1} parent=39 // pred_region
          %s516 = ssub.s32 128, 128
          %517 = vsyncadd %s508, %s516
          %s518 = smul.addr %s27, 128
          %s519 = scalar_lea.hbm %s5, %s518
          %s521 = sshll.u32 %s511, 4
          %s522 = int_to_ptr.vmem [resolvable:$true] %s521
          %524 = dma.vmem_to_hbm [thread:$0]  %s522, 128, %s519, %s508
        $region60: #{tpu_custom_call.1} parent=39 // pred_fallthru
          _
      $region40: #{tpu_custom_call.1} parent=5 // pred_fallthru
        _
      %p525 = scmp.le.s32.totalorder 2, %s18
      // Predicated region
      $region61: #{tpu_custom_call.1} parent=5 // pred_check
        %p526 = pneg %p525
      $region62: #{tpu_custom_call.1} parent=5 // pred_check_branch
        %528 = sbr.rel (%p526) target = $region64
      $region63: #{tpu_custom_call.1} parent=5 // pred_region
        %s529 = ssub.s32 %s18, 2
        // Predicated region
        $region65: #{tpu_custom_call.1} parent=63 // pred_check
          %p530 = pneg %p184
        $region66: #{tpu_custom_call.1} parent=63 // pred_check_branch
          %532 = sbr.rel (%p530) target = $region68
        $region67: #{tpu_custom_call.1} parent=63 // pred_region
          %s533 = sand.u32 %s169, 1
          %s534 = scalar_lea.sflag [#allocation4], %s533
          %s535 = sand.u32 %s169, 1
          %s536 = smul.addr %s535, 8
          %s537 = scalar_lea.vmem [#allocation8], %s536
          %538 = dma.done %s534, 128
        $region68: #{tpu_custom_call.1} parent=63 // pred_fallthru
          _
      $region64: #{tpu_custom_call.1} parent=5 // pred_fallthru
        _
    $region6: #{tpu_custom_call.1} parent=1 // loop_footer
      %s22 = sadd.s32 1, %s18
    $region7: #{tpu_custom_call.1} parent=1 // loop_footer_branch
      %17 = sbr.rel target = $region3
    $region8: #{tpu_custom_call.1} parent=1 // loop_exit
      _
    %539 = vsyncpa [#allocation3], 1
    %s540 = scalar_lea.sflag [#allocation3], 1
    %541 = vsyncpa %s540, 1
    %542 = vsyncpa [#allocation6], 1
    %543 = vsyncpa [#allocation4], 1
    %s544 = scalar_lea.sflag [#allocation4], 1
    %545 = vsyncpa %s544, 1

</llo_original>
